<compile_context>
chip_gen: v5e
topology: v5e:2x2
jax: 0.10.0
libtpu: 0.0.40
codegen_flags: <defaults>
</compile_context>

<pallas_src>
import functools

import jax
import jax.numpy as jnp
from jax.experimental import pallas as pl
from jax.experimental.pallas import tpu as pltpu


def _ce_kernel_fullc(pred_ref, tgt_ref, out_ref, *, n_total, tm):
    """Fast path: the whole class axis fits in one block (tc == C)."""
    logits = pred_ref[...].astype(jnp.float32)              # widen in-register
    m = jnp.max(logits, axis=-1, keepdims=True)
    lse = m + jnp.log(jnp.sum(jnp.exp(logits - m), axis=-1, keepdims=True))
    per_row = lse - tgt_ref[...]                             # (tm, 1) NLL
    if n_total % tm != 0:                                    # mask padded rows
        i = pl.program_id(0)
        row_ids = i * tm + jax.lax.broadcasted_iota(jnp.int32, (tm, 1), 0)
        per_row = jnp.where(row_ids < n_total, per_row, 0.0)
    out_ref[...] = per_row


def _ce_kernel_streamc(pred_ref, tgt_ref, out_ref, m_sc, s_sc,
                       *, n_total, c_total, tm, tc, c_blocks):
    """Streaming path: online logsumexp over class blocks.

    pred_ref: (tm, tc) logits tile (native dtype, widened in-register)
    tgt_ref:  (tm, 1)  f32 target logits (gathered in the wrapper)
    out_ref:  (tm, 1)  f32 per-row NLL (written on the last class block)
    m_sc/s_sc: (tm, 1) f32 running max / running sum(exp)
    """
    i = pl.program_id(0)          # row block   (parallel)
    j = pl.program_id(1)          # class block (reduction)

    @pl.when(j == 0)
    def _init():
        m_sc[...] = jnp.full(m_sc.shape, -jnp.inf, m_sc.dtype)
        s_sc[...] = jnp.zeros(s_sc.shape, s_sc.dtype)

    def update(logits):
        blk_max = jnp.max(logits, axis=-1, keepdims=True)            # (tm, 1)
        m_new = jnp.maximum(m_sc[...], blk_max)
        alpha = jnp.exp(m_sc[...] - m_new)                           # rescale old sum
        s_sc[...] = alpha * s_sc[...] + jnp.sum(jnp.exp(logits - m_new),
                                                axis=-1, keepdims=True)
        m_sc[...] = m_new

    if c_total % tc != 0:
        # C does not divide tc: mask padded class columns on the LAST block only.
        @pl.when(j != c_blocks - 1)
        def _interior():
            update(pred_ref[...].astype(jnp.float32))

        @pl.when(j == c_blocks - 1)
        def _tail():
            tail = c_total - (c_blocks - 1) * tc                     # static int
            col = jax.lax.broadcasted_iota(jnp.int32, (tm, tc), 1)
            update(jnp.where(col < tail,
                             pred_ref[...].astype(jnp.float32), -jnp.inf))
    else:
        update(pred_ref[...].astype(jnp.float32))

    @pl.when(j == c_blocks - 1)
    def _finalize():
        per_row = m_sc[...] + jnp.log(s_sc[...]) - tgt_ref[...]      # (tm, 1) NLL
        if n_total % tm != 0:                                        # mask padded rows
            row_ids = i * tm + jax.lax.broadcasted_iota(jnp.int32, (tm, 1), 0)
            per_row = jnp.where(row_ids < n_total, per_row, 0.0)
        out_ref[...] = per_row


def cross_entropy_loss(pred, gt, *, tm=None, tc=None):
    """torch.nn.CrossEntropyLoss() equivalent (mean reduction, class-index targets).

    pred: (N, C) logits, any float dtype (streamed natively, widened in-kernel)
    gt:   (N,)   integer class indices in [0, C)
    Returns a scalar float32 loss.
    If specifying tiles manually: tc must be a multiple of 128 (or >= C),
    tm a multiple of 8 (or >= N).
    """
    n, c = pred.shape
    itemsize = jnp.dtype(pred.dtype).itemsize

    # --- generation-aware budgets (v7x: 64 MiB VMEM, v5e/v6e: 128 MiB) --------
    try:
        vmem_cap = int(pltpu.get_tpu_info().vmem_capacity_bytes)
    except Exception:
        vmem_cap = 128 << 20
    small_vmem = vmem_cap <= (80 << 20)
    tile_target = (8 << 20) if small_vmem else (16 << 20)   # bytes / logits buffer
    vmem_cap_limit = (48 << 20) if small_vmem else (96 << 20)

    row_align = max(8, 32 // itemsize)   # 8 (f32), 16 (bf16), 32 (int8/fp8)

    # --- class tile: full C when it fits, else 4096-wide 128-aligned chunks ---
    if tc is None:
        tc = c if c <= 4096 else 4096
    tc = min(tc, c)

    # --- row tile: ~tile_target bytes of logits per buffer --------------------
    if tm is None:
        tm = tile_target // max(1, tc * itemsize)
        tm = int(max(row_align, min(2048, (tm // row_align) * row_align)))
        if n <= tm:
            if n >= 256:
                # keep >= 2 row blocks so v7x's two TensorCores both get work
                half = -(-n // 2)
                tm = -(-half // row_align) * row_align
            else:
                tm = n                                     # single full-dim block
    else:
        tm = min(tm, n)

    n_blocks = -(-n // tm)
    c_blocks = -(-c // tc)
    n_pad = n_blocks * tm

    # Target logit pred[i, gt[i]] gathered once here (O(N) bytes) so the hot
    # O(N*C) streaming loop carries no per-element one-hot / iota / select work.
    gt_idx = gt.astype(jnp.int32).reshape(n, 1)
    tgt = jnp.take_along_axis(pred, gt_idx, axis=-1).astype(jnp.float32)   # (n, 1)

    if c_blocks == 1:
        kernel = functools.partial(_ce_kernel_fullc, n_total=n, tm=tm)
        scratch_shapes = []
    else:
        kernel = functools.partial(_ce_kernel_streamc, n_total=n, c_total=c,
                                   tm=tm, tc=tc, c_blocks=c_blocks)
        scratch_shapes = [pltpu.VMEM((tm, 1), jnp.float32)] * 2

    # Double-buffered logit tiles + lane-padded target/output/scratch columns.
    need = 2 * tm * tc * itemsize + 6 * tm * 128 * 4
    vmem_limit = int(min(max(need + (16 << 20), 32 << 20), vmem_cap_limit))

    per_row = pl.pallas_call(
        kernel,
        out_shape=jax.ShapeDtypeStruct((n_pad, 1), jnp.float32),
        grid_spec=pltpu.PrefetchScalarGridSpec(
            num_scalar_prefetch=0,
            grid=(n_blocks, c_blocks),
            in_specs=[
                pl.BlockSpec((tm, tc), lambda i, j: (i, j)),   # logits stream
                pl.BlockSpec((tm, 1), lambda i, j: (i, 0)),    # target logits
            ],
            out_specs=pl.BlockSpec((tm, 1), lambda i, j: (i, 0)),
            scratch_shapes=scratch_shapes,
        ),
        compiler_params=pltpu.CompilerParams(
            dimension_semantics=("parallel", "arbitrary"),
            vmem_limit_bytes=vmem_limit,
        ),
    )(pred, tgt)

    # Final mean over the GLOBAL N in plain JAX (padded rows contribute exactly 0).
    return jnp.sum(per_row) / jnp.float32(n)


def _reference_ce(pred, gt):
    # pure-JAX reference matching torch.nn.CrossEntropyLoss (mean reduction)
    logp = jax.nn.log_softmax(pred.astype(jnp.float32), axis=-1)
    nll = -jnp.take_along_axis(logp, gt[:, None].astype(jnp.int32), axis=-1)
    return jnp.mean(nll)


if __name__ == "__main__":
    key = jax.random.PRNGKey(0)
    k1, k2, k3, k4, k5, k6, k7, k8 = jax.random.split(key, 8)

    # Case 1: small shapes consistent with the original module (f32 logits,
    # single-class-block fast path).
    N1, C1 = 8, 32
    pred1 = jax.random.normal(k1, (N1, C1), dtype=jnp.float32)
    gt1 = jax.random.randint(k2, (N1,), 0, C1, dtype=jnp.int32)
    loss1 = cross_entropy_loss(pred1, gt1)

    # Case 2: exercises multi-block row/class tiling + row/class tail masks
    # (N not a multiple of TM, C not a multiple of TC) with online logsumexp.
    N2, C2 = 20, 200
    pred2 = jax.random.normal(k3, (N2, C2), dtype=jnp.float32) * 3.0
    gt2 = jax.random.randint(k4, (N2,), 0, C2, dtype=jnp.int32)
    loss2 = cross_entropy_loss(pred2, gt2, tm=8, tc=128)

    # Case 3: native bf16 streaming (widened to f32 inside the kernel).
    N3, C3 = 16, 128
    pred3 = jax.random.normal(k5, (N3, C3), dtype=jnp.bfloat16)
    gt3 = jax.random.randint(k6, (N3,), 0, C3, dtype=jnp.int32)
    loss3 = cross_entropy_loss(pred3, gt3)

    # Case 4: auto-tiling with N >= 256 -> >= 2 row blocks (dual-TC friendly),
    # bf16 logits, single class block.
    N4, C4 = 384, 256
    pred4 = jax.random.normal(k7, (N4, C4), dtype=jnp.bfloat16)
    gt4 = jax.random.randint(k8, (N4,), 0, C4, dtype=jnp.int32)
    loss4 = cross_entropy_loss(pred4, gt4)

    jax.block_until_ready((loss1, loss2, loss3, loss4))

    ref1 = _reference_ce(pred1, gt1)
    ref2 = _reference_ce(pred2, gt2)
    ref3 = _reference_ce(pred3, gt3)
    ref4 = _reference_ce(pred4, gt4)

    assert jnp.allclose(loss1, ref1, atol=1e-5, rtol=1e-5), (loss1, ref1)
    assert jnp.allclose(loss2, ref2, atol=1e-5, rtol=1e-5), (loss2, ref2)
    assert jnp.allclose(loss3, ref3, atol=1e-5, rtol=1e-5), (loss3, ref3)
    assert jnp.allclose(loss4, ref4, atol=1e-5, rtol=1e-5), (loss4, ref4)
    print("KERNEL_OK")
</pallas_src>

<mosaic_0001>
module attributes {stable_mosaic.version = 11 : i64} {
  func.func @_ce_kernel_fullc(%arg0: i32, %arg1: i32, %arg2: memref<8x32xf32, #tpu.memory_space<vmem>>, %arg3: memref<8x1xf32, #tpu.memory_space<vmem>>, %arg4: memref<8x1xf32, #tpu.memory_space<vmem>>) attributes {dimension_semantics = [#tpu.dimension_semantics<parallel>, #tpu.dimension_semantics<arbitrary>], iteration_bounds = array<i64: 1, 1>, scalar_prefetch = 0 : i64, scratch_operands = 0 : i64, tpu.core_type = #tpu.core_type<tc>, window_params = [{transform_indices = @transform_0, window_bounds = array<i64: 8, 32>}, {transform_indices = @transform_1, window_bounds = array<i64: 8, 1>}, {transform_indices = @transform_2, window_bounds = array<i64: 8, 1>}]} {
    %c0 = arith.constant 0 : index
    %c0_0 = arith.constant 0 : index
    %0 = vector.load %arg2[%c0, %c0_0] : memref<8x32xf32, #tpu.memory_space<vmem>>, vector<8x32xf32>
    %cst = arith.constant dense<0xFF800000> : vector<8xf32>
    %1 = vector.multi_reduction <maximumf>, %0, %cst [1] : vector<8x32xf32> to vector<8xf32>
    %2 = vector.shape_cast %1 : vector<8xf32> to vector<8x1xf32>
    %3 = vector.broadcast %2 : vector<8x1xf32> to vector<8x32xf32>
    %4 = arith.subf %0, %3 : vector<8x32xf32>
    %5 = math.exp %4 : vector<8x32xf32>
    %cst_1 = arith.constant dense<0.000000e+00> : vector<8xf32>
    %6 = vector.multi_reduction <add>, %5, %cst_1 [1] : vector<8x32xf32> to vector<8xf32>
    %7 = vector.shape_cast %6 : vector<8xf32> to vector<8x1xf32>
    %8 = math.log %7 : vector<8x1xf32>
    %9 = arith.addf %2, %8 : vector<8x1xf32>
    %c0_2 = arith.constant 0 : index
    %c0_3 = arith.constant 0 : index
    %10 = vector.load %arg3[%c0_2, %c0_3] : memref<8x1xf32, #tpu.memory_space<vmem>>, vector<8x1xf32>
    %11 = arith.subf %9, %10 : vector<8x1xf32>
    %c0_4 = arith.constant 0 : index
    %c0_5 = arith.constant 0 : index
    %12 = vector.load %arg4[%c0_4, %c0_5] : memref<8x1xf32, #tpu.memory_space<vmem>>, vector<8x1xf32>
    tpu.vector_store %arg4[%c0_4, %c0_5], %11 {strides = array<i32>} : memref<8x1xf32, #tpu.memory_space<vmem>>, vector<8x1xf32>,
    return
  }
  func.func @transform_0(%arg0: i32, %arg1: i32) -> (i32, i32) {
    %c0_i32 = arith.constant 0 : i32
    return %arg0, %arg1 : i32, i32
  }
  func.func @transform_1(%arg0: i32, %arg1: i32) -> (i32, i32) {
    %c0_i32 = arith.constant 0 : i32
    %c0_i32_0 = arith.constant 0 : i32
    return %arg0, %c0_i32 : i32, i32
  }
  func.func @transform_2(%arg0: i32, %arg1: i32) -> (i32, i32) {
    %c0_i32 = arith.constant 0 : i32
    %c0_i32_0 = arith.constant 0 : i32
    return %arg0, %c0_i32 : i32, i32
  }
}

</mosaic_0001>

<llo_original>
// kernel: tpu_custom_call.1
$region0: #{tpu_custom_call.1}
  #allocation0 [shape = 'u32[]', space=smem, size = 0x4, offset = 0x4, fixed_abs, tag = 'smem constant byte address 0x4 - core index']
  #allocation1 [shape = 'u32[72,128]{1,0:T(1,128)}', space=vmem, size = 0x9000, scoped, tag = 'internal scratch']
  %s0 = inlined_call_operand.vmem [shape: f32[8,32], index: 0, kind: input, shape index: {}]
  %s1 = inlined_call_operand.vmem [shape: f32[8,1], index: 1, kind: input, shape index: {}]
  %s2 = inlined_call_operand.vmem [shape: f32[8,1], index: 2, kind: output, shape index: {}]
  %s3 = sld [smem:[#allocation0]]
  $region18: #{tpu_custom_call.1} parent=0
    _
  %s5 = ssub.s32 1, %s3
  %s6 = scalar_select 0, %s5, %s3
  // Predicated region
  $region2: #{tpu_custom_call.1} parent=0 // pred_check
    _
  $region3: #{tpu_custom_call.1} parent=0 // pred_check_branch
    %8 = sbr.rel (0) target = $region5
  $region4: #{tpu_custom_call.1} parent=0 // pred_region
    _
  $region5: #{tpu_custom_call.1} parent=0 // pred_fallthru
    _
  // Predicated region
  $region6: #{tpu_custom_call.1} parent=0 // pred_check
    _
  $region7: #{tpu_custom_call.1} parent=0 // pred_check_branch
    %10 = sbr.rel (0) target = $region9
  $region8: #{tpu_custom_call.1} parent=0 // pred_region
    _
  $region9: #{tpu_custom_call.1} parent=0 // pred_fallthru
    _
  %v11 = vld [vmem:[%s0] sm:$0xff]
  %vm12 = vcmask 261120
  %v13 = vsel %vm12, %v11, -inf
  %14 = vmax.xlane.f32.xlu0 %v13
  %v15 = vpop.xlane.xlu0 %14
  %v16 = vsub.f32 %v11, %v15
  %v17 = vmul.f32 %v16, 1.442695
  %v18 = vpow.pop %v17
  %v19 = vsel %vm12, %v18, 0.0
  %20 = vadd.xlane.f32.xlu0 %v19
  %v21 = vpop.xlane.xlu0 %20
  %v22 = vlog2.pop %v21
  %v23 = vmul.f32 %v22, 0.6931472
  %v24 = vadd.f32 %v15, %v23
  %v25 = vld [vmem:[%s1] sm:$0xff]
  %v26 = vsub.f32 %v24, %v25
  %vm27 = vcmask 7168
  %28 = vst.msk [vmem:[%s2] sm:$0xff] %vm27, %v26
  // Predicated region
  $region10: #{tpu_custom_call.1} parent=0 // pred_check
    _
  $region11: #{tpu_custom_call.1} parent=0 // pred_check_branch
    %30 = sbr.rel (0) target = $region13
  $region12: #{tpu_custom_call.1} parent=0 // pred_region
    _
  $region13: #{tpu_custom_call.1} parent=0 // pred_fallthru
    _
  // Predicated region
  $region14: #{tpu_custom_call.1} parent=0 // pred_check
    _
  $region15: #{tpu_custom_call.1} parent=0 // pred_check_branch
    %32 = sbr.rel (0) target = $region17
  $region16: #{tpu_custom_call.1} parent=0 // pred_region
    _
  $region17: #{tpu_custom_call.1} parent=0 // pred_fallthru
    _

</llo_original>
